<compile_context>
chip_gen: v5e
topology: v5e:2x2
jax: 0.10.0
libtpu: 0.0.40
codegen_flags: <defaults>
</compile_context>

<pallas_src>
import functools
import math

import jax
import jax.numpy as jnp
from jax.experimental import pallas as pl
from jax.experimental.pallas import tpu as pltpu

ALPHA = 0.25
GAMMA = 2  # integer exponent -> lowers to plain multiplies on the VPU

_LANE = 128


def _focal_loss_kernel(x_ref, t_ref, o_ref, *, alpha, gamma):
    x = x_ref[...].astype(jnp.float32)
    t = t_ref[...].astype(jnp.float32)

    # Shared transcendental: e = exp(-|x|) feeds both the sigmoid and the
    # numerically stable BCE-with-logits term -> 1 EUP exp + 1 EUP log per elem.
    e = jnp.exp(-jnp.abs(x))

    # sigmoid(x) = 1/(1+e) for x >= 0, e/(1+e) for x < 0.
    r = pl.reciprocal(1.0 + e, approx=True)  # cheap approximate EUP vrcp
    pred = jnp.where(x >= 0.0, r, e * r)

    # binary_cross_entropy_with_logits, reduction='none' (numerically stable):
    #   ce = max(x, 0) - x*t + log(1 + exp(-|x|))
    ce = jnp.maximum(x, 0.0) - x * t + jnp.log1p(e)

    # alpha weighting
    a = t * alpha + (1.0 - t) * (1.0 - alpha)

    # pt = pred where target == 1 else (1 - pred)
    # NOTE: exact-equality test matches the PyTorch module (hard 0/1 labels).
    pt = jnp.where(t == 1.0, pred, 1.0 - pred)

    out = a * (1.0 - pt) ** gamma * ce
    o_ref[...] = out.astype(o_ref.dtype)


def _min_sublanes(dtype):
    # Min sublane tile per dtype packing: f32 -> 8, bf16 -> 16, int8/fp8 -> 32.
    return {4: 8, 2: 16, 1: 32}.get(jnp.dtype(dtype).itemsize, 8)


def focal_loss(pred_logits, target, alpha=ALPHA, gamma=GAMMA, *,
               block_rows=512, lane_width=512):
    assert pred_logits.shape == target.shape
    orig_shape = pred_logits.shape
    out_dtype = pred_logits.dtype
    n = math.prod(orig_shape) if orig_shape else 1

    # Lane-dense slab width (multiple of 128 -> unmasked, wide vst / long DMAs).
    lanes = max(_LANE, (int(lane_width) // _LANE) * _LANE)
    rows = pl.cdiv(n, lanes)

    # Block rows: multiple of the dtype's min sublane tile, capped by row count.
    sub = max(_min_sublanes(pred_logits.dtype),
              _min_sublanes(target.dtype),
              _min_sublanes(out_dtype))
    br = max(sub, min(int(block_rows), pl.cdiv(rows, sub) * sub))
    br = pl.cdiv(br, sub) * sub

    rows_pad = pl.cdiv(rows, br) * br
    n_pad = rows_pad * lanes

    # Keep the original dtype end-to-end; pad only when the size doesn't tile.
    x_flat = pred_logits.reshape(-1)
    t_flat = target.reshape(-1)
    if n_pad != n:
        x_flat = jnp.pad(x_flat, (0, n_pad - n))
        t_flat = jnp.pad(t_flat, (0, n_pad - n))
    x2d = x_flat.reshape(rows_pad, lanes)
    t2d = t_flat.reshape(rows_pad, lanes)

    grid = (rows_pad // br,)
    kernel = functools.partial(_focal_loss_kernel,
                               alpha=float(alpha), gamma=gamma)

    bytes_accessed = n_pad * (jnp.dtype(pred_logits.dtype).itemsize
                              + jnp.dtype(target.dtype).itemsize
                              + jnp.dtype(out_dtype).itemsize)
    cost = pl.CostEstimate(flops=14 * n_pad,
                           transcendentals=3 * n_pad,
                           bytes_accessed=bytes_accessed)

    out2d = pl.pallas_call(
        kernel,
        out_shape=jax.ShapeDtypeStruct((rows_pad, lanes), out_dtype),
        grid_spec=pltpu.PrefetchScalarGridSpec(
            num_scalar_prefetch=0,
            grid=grid,
            in_specs=[
                pl.BlockSpec((br, lanes), lambda i: (i, 0)),
                pl.BlockSpec((br, lanes), lambda i: (i, 0)),
            ],
            out_specs=pl.BlockSpec((br, lanes), lambda i: (i, 0)),
        ),
        compiler_params=pltpu.CompilerParams(
            dimension_semantics=("parallel",)),
        cost_estimate=cost,
    )(x2d, t2d)

    if n_pad != n:
        out = out2d.reshape(-1)[:n].reshape(orig_shape)
    else:
        out = out2d.reshape(orig_shape)
    return out


def _focal_loss_ref(pred_logits, target, alpha=ALPHA, gamma=GAMMA):
    x = pred_logits.astype(jnp.float32)
    t = target.astype(jnp.float32)
    pred = jax.nn.sigmoid(x)
    ce = jnp.maximum(x, 0.0) - x * t + jnp.log1p(jnp.exp(-jnp.abs(x)))
    a = t * alpha + (1.0 - t) * (1.0 - alpha)
    pt = jnp.where(t == 1.0, pred, 1.0 - pred)
    return (a * (1.0 - pt) ** gamma * ce).astype(pred_logits.dtype)


if __name__ == "__main__":
    key = jax.random.PRNGKey(0)

    # Tolerances are loosened slightly vs. exact math because the kernel uses
    # the approximate EUP reciprocal (pl.reciprocal(approx=True)) for sigmoid.
    ATOL, RTOL = 1e-3, 2e-2

    # 1) NCHW-shaped inputs, consistent with the detection-head usage.
    k1, k2, k3, k4 = jax.random.split(key, 4)
    shape = (2, 4, 16, 16)
    pred_logits = jax.random.normal(k1, shape, dtype=jnp.float32) * 2.0
    target = (jax.random.uniform(k2, shape) > 0.7).astype(jnp.float32)

    out = focal_loss(pred_logits, target)
    jax.block_until_ready(out)
    ref = _focal_loss_ref(pred_logits, target)
    assert out.shape == shape and out.dtype == pred_logits.dtype
    assert jnp.allclose(out, ref, atol=ATOL, rtol=RTOL)

    # 2) Medium-size check that exercises the exact-tiling (no padding) path,
    #    the large (512 x 512) blocks, and a multi-step parallel grid.
    shape2 = (4, 8, 256, 256)  # 2,097,152 elems -> grid of 8 steps
    pl2 = jax.random.normal(k3, shape2, dtype=jnp.float32) * 2.0
    tg2 = (jax.random.uniform(k4, shape2) > 0.7).astype(jnp.float32)

    out2 = focal_loss(pl2, tg2)
    jax.block_until_ready(out2)
    ref2 = _focal_loss_ref(pl2, tg2)
    assert out2.shape == shape2
    assert jnp.allclose(out2, ref2, atol=ATOL, rtol=RTOL)

    print("KERNEL_OK")
</pallas_src>

<mosaic_0001>
module attributes {stable_mosaic.version = 11 : i64} {
  func.func @_focal_loss_kernel(%arg0: i32, %arg1: memref<8x512xf32, #tpu.memory_space<vmem>>, %arg2: memref<8x512xf32, #tpu.memory_space<vmem>>, %arg3: memref<8x512xf32, #tpu.memory_space<vmem>>) attributes {dimension_semantics = [#tpu.dimension_semantics<parallel>], iteration_bounds = array<i64: 1>, scalar_prefetch = 0 : i64, scratch_operands = 0 : i64, tpu.core_type = #tpu.core_type<tc>, window_params = [{transform_indices = @transform_0, window_bounds = array<i64: 8, 512>}, {transform_indices = @transform_1, window_bounds = array<i64: 8, 512>}, {transform_indices = @transform_2, window_bounds = array<i64: 8, 512>}]} {
    %c0 = arith.constant 0 : index
    %c0_0 = arith.constant 0 : index
    %0 = vector.load %arg1[%c0, %c0_0] : memref<8x512xf32, #tpu.memory_space<vmem>>, vector<8x512xf32>
    %c0_1 = arith.constant 0 : index
    %c0_2 = arith.constant 0 : index
    %1 = vector.load %arg2[%c0_1, %c0_2] : memref<8x512xf32, #tpu.memory_space<vmem>>, vector<8x512xf32>
    %2 = math.absf %0 : vector<8x512xf32>
    %cst = arith.constant 0.000000e+00 : f32
    %3 = vector.broadcast %cst : f32 to vector<8x512xf32>
    %4 = arith.subf %3, %2 : vector<8x512xf32>
    %5 = math.exp %4 : vector<8x512xf32>
    %cst_3 = arith.constant 1.000000e+00 : f32
    %6 = vector.broadcast %cst_3 : f32 to vector<8x512xf32>
    %7 = arith.addf %6, %5 : vector<8x512xf32>
    %8 = tpu.reciprocal %7 {approx = true} : vector<8x512xf32> -> vector<8x512xf32>
    %cst_4 = arith.constant 0.000000e+00 : f32
    %9 = vector.broadcast %cst_4 : f32 to vector<8x512xf32>
    %10 = arith.cmpf oge, %0, %9 : vector<8x512xf32>
    %11 = arith.mulf %5, %8 : vector<8x512xf32>
    %12 = arith.select %10, %8, %11 : vector<8x512xi1>, vector<8x512xf32>
    %cst_5 = arith.constant 0.000000e+00 : f32
    %13 = vector.broadcast %cst_5 : f32 to vector<8x512xf32>
    %14 = arith.maximumf %0, %13 : vector<8x512xf32>
    %15 = arith.mulf %0, %1 : vector<8x512xf32>
    %16 = arith.subf %14, %15 : vector<8x512xf32>
    %17 = math.log1p %5 : vector<8x512xf32>
    %18 = arith.addf %16, %17 : vector<8x512xf32>
    %cst_6 = arith.constant 2.500000e-01 : f32
    %19 = vector.broadcast %cst_6 : f32 to vector<8x512xf32>
    %20 = arith.mulf %1, %19 : vector<8x512xf32>
    %cst_7 = arith.constant 1.000000e+00 : f32
    %21 = vector.broadcast %cst_7 : f32 to vector<8x512xf32>
    %22 = arith.subf %21, %1 : vector<8x512xf32>
    %cst_8 = arith.constant 7.500000e-01 : f32
    %23 = vector.broadcast %cst_8 : f32 to vector<8x512xf32>
    %24 = arith.mulf %22, %23 : vector<8x512xf32>
    %25 = arith.addf %20, %24 : vector<8x512xf32>
    %cst_9 = arith.constant 1.000000e+00 : f32
    %26 = vector.broadcast %cst_9 : f32 to vector<8x512xf32>
    %27 = arith.cmpf oeq, %1, %26 : vector<8x512xf32>
    %cst_10 = arith.constant 1.000000e+00 : f32
    %28 = vector.broadcast %cst_10 : f32 to vector<8x512xf32>
    %29 = arith.subf %28, %12 : vector<8x512xf32>
    %30 = arith.select %27, %12, %29 : vector<8x512xi1>, vector<8x512xf32>
    %cst_11 = arith.constant 1.000000e+00 : f32
    %31 = vector.broadcast %cst_11 : f32 to vector<8x512xf32>
    %32 = arith.subf %31, %30 : vector<8x512xf32>
    %33 = arith.mulf %32, %32 : vector<8x512xf32>
    %34 = arith.mulf %25, %33 : vector<8x512xf32>
    %35 = arith.mulf %34, %18 : vector<8x512xf32>
    %c0_12 = arith.constant 0 : index
    %c0_13 = arith.constant 0 : index
    %36 = vector.load %arg3[%c0_12, %c0_13] : memref<8x512xf32, #tpu.memory_space<vmem>>, vector<8x512xf32>
    tpu.vector_store %arg3[%c0_12, %c0_13], %35 {strides = array<i32>} : memref<8x512xf32, #tpu.memory_space<vmem>>, vector<8x512xf32>,
    return
  }
  func.func @transform_0(%arg0: i32) -> (i32, i32) {
    %c0_i32 = arith.constant 0 : i32
    %c0_i32_0 = arith.constant 0 : i32
    return %arg0, %c0_i32 : i32, i32
  }
  func.func @transform_1(%arg0: i32) -> (i32, i32) {
    %c0_i32 = arith.constant 0 : i32
    %c0_i32_0 = arith.constant 0 : i32
    return %arg0, %c0_i32 : i32, i32
  }
  func.func @transform_2(%arg0: i32) -> (i32, i32) {
    %c0_i32 = arith.constant 0 : i32
    %c0_i32_0 = arith.constant 0 : i32
    return %arg0, %c0_i32 : i32, i32
  }
}

</mosaic_0001>

<llo_original>
// kernel: tpu_custom_call.1
$region0: #{tpu_custom_call.1}
  #allocation0 [shape = 'u32[]', space=smem, size = 0x4, offset = 0x4, fixed_abs, tag = 'smem constant byte address 0x4 - core index']
  #allocation1 [shape = 'u32[72,128]{1,0:T(1,128)}', space=vmem, size = 0x9000, scoped, tag = 'internal scratch']
  %s0 = inlined_call_operand.hbm [shape: f32[8,512], index: 0, kind: input, shape index: {}]
  %s1 = inlined_call_operand.hbm [shape: f32[8,512], index: 1, kind: input, shape index: {}]
  %s2 = inlined_call_operand.hbm [shape: f32[8,512], index: 2, kind: output, shape index: {}]
  %s3 = sld [smem:[#allocation0]]
  $region26: #{tpu_custom_call.1} parent=0
    _
  %s5 = ssub.s32 1, %s3
  %s6 = scalar_select 0, %s5, %s3
  $region1: #{tpu_custom_call.1} parent=0
    #allocation2 [shape = 'u8[16384]{0}', space=vmem, size = 0x4000, scoped, tag = 'input window, operand 0, single buffered']
    #allocation3 [shape = 's32[1]{0}', space=sflag, size = 0x4, scoped, tag = 'scoped memory for tpu_custom_call.1']
    #allocation4 [shape = 's32[1]{0}', space=sflag, size = 0x4, scoped, tag = 'scoped memory for tpu_custom_call.1']
    #allocation5 [shape = 'u8[16384]{0}', space=vmem, size = 0x4000, scoped, tag = 'input window, operand 1, single buffered']
    #allocation6 [shape = 's32[1]{0}', space=sflag, size = 0x4, scoped, tag = 'scoped memory for tpu_custom_call.1']
    #allocation7 [shape = 'u8[16384]{0}', space=vmem, size = 0x4000, scoped, tag = 'output window, operand 0, single buffered']
    %7 = vsyncpa [#allocation3], 0
    %8 = vsyncpa [#allocation6], 0
    %9 = vsyncpa [#allocation4], 0
    // Predicated region
    $region2: #{tpu_custom_call.1} parent=1 // pred_check
      _
    $region3: #{tpu_custom_call.1} parent=1 // pred_check_branch
      %11 = sbr.rel (0) target = $region5
    $region4: #{tpu_custom_call.1} parent=1 // pred_region
      %13 = vsyncadd [#allocation3], 0
      %s15 = sshll.u32 %s0, 4
      %s16 = int_to_ptr.hbm [resolvable:$true] %s15
      %s17 = sshll.u32 [#allocation2], 4
      %s18 = int_to_ptr.vmem [resolvable:$true] %s17
      %20 = dma.hbm_to_vmem [thread:$0]  %s16, 512, %s18, [#allocation3]
    $region5: #{tpu_custom_call.1} parent=1 // pred_fallthru
      _
    // Predicated region
    $region6: #{tpu_custom_call.1} parent=1 // pred_check
      _
    $region7: #{tpu_custom_call.1} parent=1 // pred_check_branch
      %22 = sbr.rel (0) target = $region9
    $region8: #{tpu_custom_call.1} parent=1 // pred_region
      %24 = vsyncadd [#allocation6], 0
      %s26 = sshll.u32 %s1, 4
      %s27 = int_to_ptr.hbm [resolvable:$true] %s26
      %s28 = sshll.u32 [#allocation5], 4
      %s29 = int_to_ptr.vmem [resolvable:$true] %s28
      %31 = dma.hbm_to_vmem [thread:$0]  %s27, 512, %s29, [#allocation6]
    $region9: #{tpu_custom_call.1} parent=1 // pred_fallthru
      _
    // Predicated region
    $region10: #{tpu_custom_call.1} parent=1 // pred_check
      _
    $region11: #{tpu_custom_call.1} parent=1 // pred_check_branch
      %33 = sbr.rel (0) target = $region13
    $region12: #{tpu_custom_call.1} parent=1 // pred_region
      %35 = dma.done [#allocation3], 512
    $region13: #{tpu_custom_call.1} parent=1 // pred_fallthru
      _
    // Predicated region
    $region14: #{tpu_custom_call.1} parent=1 // pred_check
      _
    $region15: #{tpu_custom_call.1} parent=1 // pred_check_branch
      %37 = sbr.rel (0) target = $region17
    $region16: #{tpu_custom_call.1} parent=1 // pred_region
      %39 = dma.done [#allocation6], 512
    $region17: #{tpu_custom_call.1} parent=1 // pred_fallthru
      _
    %v40 = vld [vmem:[#allocation2] sm:$0xff]
    %v41 = vld [vmem:[#allocation2 + $0x8] sm:$0xff]
    %v42 = vld [vmem:[#allocation2 + $0x10] sm:$0xff]
    %v43 = vld [vmem:[#allocation2 + $0x18] sm:$0xff]
    %v44 = vld [vmem:[#allocation5] sm:$0xff]
    %v45 = vld [vmem:[#allocation5 + $0x8] sm:$0xff]
    %v46 = vld [vmem:[#allocation5 + $0x10] sm:$0xff]
    %v47 = vld [vmem:[#allocation5 + $0x18] sm:$0xff]
    %v48 = vand.u32 2147483647, %v40
    %v49 = vand.u32 2147483647, %v41
    %v50 = vand.u32 2147483647, %v42
    %v51 = vand.u32 2147483647, %v43
    %v52 = vsub.f32 0.0, %v48
    %v53 = vsub.f32 0.0, %v49
    %v54 = vsub.f32 0.0, %v50
    %v55 = vsub.f32 0.0, %v51
    %v56 = vmul.f32 %v52, 1.442695
    %v57 = vpow.pop %v56
    %v58 = vmul.f32 %v53, 1.442695
    %v59 = vpow.pop %v58
    %v60 = vmul.f32 %v54, 1.442695
    %v61 = vpow.pop %v60
    %v62 = vmul.f32 %v55, 1.442695
    %v63 = vpow.pop %v62
    %v64 = vadd.f32 %v57, 1.0
    %v65 = vadd.f32 %v59, 1.0
    %v66 = vadd.f32 %v61, 1.0
    %v67 = vadd.f32 %v63, 1.0
    %v68 = vrcp.pop %v64
    %v69 = vrcp.pop %v65
    %v70 = vrcp.pop %v66
    %v71 = vrcp.pop %v67
    %vm72 = vcmp.ge.f32.partialorder %v40, 0.0
    %vm73 = vcmp.ge.f32.partialorder %v41, 0.0
    %vm74 = vcmp.ge.f32.partialorder %v42, 0.0
    %vm75 = vcmp.ge.f32.partialorder %v43, 0.0
    %v76 = vmul.f32 %v57, %v68
    %v77 = vmul.f32 %v59, %v69
    %v78 = vmul.f32 %v61, %v70
    %v79 = vmul.f32 %v63, %v71
    %v80 = vsel %vm72, %v68, %v76
    %v81 = vsel %vm73, %v69, %v77
    %v82 = vsel %vm74, %v70, %v78
    %v83 = vsel %vm75, %v71, %v79
    %v84 = vmax.f32 %v40, 0.0
    %v85 = vmax.f32 %v41, 0.0
    %v86 = vmax.f32 %v42, 0.0
    %v87 = vmax.f32 %v43, 0.0
    %v88 = vmul.f32 %v40, %v44
    %v89 = vmul.f32 %v41, %v45
    %v90 = vmul.f32 %v42, %v46
    %v91 = vmul.f32 %v43, %v47
    %v92 = vsub.f32 %v84, %v88
    %v93 = vsub.f32 %v85, %v89
    %v94 = vsub.f32 %v86, %v90
    %v95 = vsub.f32 %v87, %v91
    %v96 = vadd.f32 %v57, 1.0
    %v97 = vlog2.pop %v96
    %v98 = vmul.f32 %v97, 0.6931472
    %v99 = vmul.f32 -0.5, %v57
    %v100 = vadd.f32 %v99, 1.0
    %v101 = vmul.f32 %v100, %v57
    %v102 = vand.u32 2147483647, %v57
    %vm103 = vcmp.lt.f32.partialorder %v102, 0.0004427343
    %v104 = vsel %vm103, %v101, %v98
    %v105 = vadd.f32 %v59, 1.0
    %v106 = vlog2.pop %v105
    %v107 = vmul.f32 %v106, 0.6931472
    %v108 = vmul.f32 -0.5, %v59
    %v109 = vadd.f32 %v108, 1.0
    %v110 = vmul.f32 %v109, %v59
    %v111 = vand.u32 2147483647, %v59
    %vm112 = vcmp.lt.f32.partialorder %v111, 0.0004427343
    %v113 = vsel %vm112, %v110, %v107
    %v114 = vadd.f32 %v61, 1.0
    %v115 = vlog2.pop %v114
    %v116 = vmul.f32 %v115, 0.6931472
    %v117 = vmul.f32 -0.5, %v61
    %v118 = vadd.f32 %v117, 1.0
    %v119 = vmul.f32 %v118, %v61
    %v120 = vand.u32 2147483647, %v61
    %vm121 = vcmp.lt.f32.partialorder %v120, 0.0004427343
    %v122 = vsel %vm121, %v119, %v116
    %v123 = vadd.f32 %v63, 1.0
    %v124 = vlog2.pop %v123
    %v125 = vmul.f32 %v124, 0.6931472
    %v126 = vmul.f32 -0.5, %v63
    %v127 = vadd.f32 %v126, 1.0
    %v128 = vmul.f32 %v127, %v63
    %v129 = vand.u32 2147483647, %v63
    %vm130 = vcmp.lt.f32.partialorder %v129, 0.0004427343
    %v131 = vsel %vm130, %v128, %v125
    %v132 = vadd.f32 %v92, %v104
    %v133 = vadd.f32 %v93, %v113
    %v134 = vadd.f32 %v94, %v122
    %v135 = vadd.f32 %v95, %v131
    %v136 = vmul.f32 %v44, 0.25
    %v137 = vmul.f32 %v45, 0.25
    %v138 = vmul.f32 %v46, 0.25
    %v139 = vmul.f32 %v47, 0.25
    %v140 = vsub.f32 1.0, %v44
    %v141 = vsub.f32 1.0, %v45
    %v142 = vsub.f32 1.0, %v46
    %v143 = vsub.f32 1.0, %v47
    %v144 = vmul.f32 %v140, 0.75
    %v145 = vmul.f32 %v141, 0.75
    %v146 = vmul.f32 %v142, 0.75
    %v147 = vmul.f32 %v143, 0.75
    %v148 = vadd.f32 %v136, %v144
    %v149 = vadd.f32 %v137, %v145
    %v150 = vadd.f32 %v138, %v146
    %v151 = vadd.f32 %v139, %v147
    %vm152 = vcmp.eq.f32.partialorder %v44, 1.0
    %vm153 = vcmp.eq.f32.partialorder %v45, 1.0
    %vm154 = vcmp.eq.f32.partialorder %v46, 1.0
    %vm155 = vcmp.eq.f32.partialorder %v47, 1.0
    %v156 = vsub.f32 1.0, %v80
    %v157 = vsub.f32 1.0, %v81
    %v158 = vsub.f32 1.0, %v82
    %v159 = vsub.f32 1.0, %v83
    %v160 = vsel %vm152, %v80, %v156
    %v161 = vsel %vm153, %v81, %v157
    %v162 = vsel %vm154, %v82, %v158
    %v163 = vsel %vm155, %v83, %v159
    %v164 = vsub.f32 1.0, %v160
    %v165 = vsub.f32 1.0, %v161
    %v166 = vsub.f32 1.0, %v162
    %v167 = vsub.f32 1.0, %v163
    %v168 = vmul.f32 %v164, %v164
    %v169 = vmul.f32 %v165, %v165
    %v170 = vmul.f32 %v166, %v166
    %v171 = vmul.f32 %v167, %v167
    %v172 = vmul.f32 %v148, %v168
    %v173 = vmul.f32 %v149, %v169
    %v174 = vmul.f32 %v150, %v170
    %v175 = vmul.f32 %v151, %v171
    %v176 = vmul.f32 %v172, %v132
    %v177 = vmul.f32 %v173, %v133
    %v178 = vmul.f32 %v174, %v134
    %v179 = vmul.f32 %v175, %v135
    %180 = vst [vmem:[#allocation7] sm:$0xff] %v176
    %181 = vst [vmem:[#allocation7 + $0x8] sm:$0xff] %v177
    %182 = vst [vmem:[#allocation7 + $0x10] sm:$0xff] %v178
    %183 = vst [vmem:[#allocation7 + $0x18] sm:$0xff] %v179
    // Predicated region
    $region18: #{tpu_custom_call.1} parent=1 // pred_check
      _
    $region19: #{tpu_custom_call.1} parent=1 // pred_check_branch
      %185 = sbr.rel (0) target = $region21
    $region20: #{tpu_custom_call.1} parent=1 // pred_region
      %187 = vsyncadd [#allocation4], 0
      %s189 = sshll.u32 [#allocation7], 4
      %s190 = int_to_ptr.vmem [resolvable:$true] %s189
      %s191 = sshll.u32 %s2, 4
      %s192 = int_to_ptr.hbm [resolvable:$true] %s191
      %194 = dma.vmem_to_hbm [thread:$0]  %s190, 512, %s192, [#allocation4]
    $region21: #{tpu_custom_call.1} parent=1 // pred_fallthru
      _
    // Predicated region
    $region22: #{tpu_custom_call.1} parent=1 // pred_check
      _
    $region23: #{tpu_custom_call.1} parent=1 // pred_check_branch
      %196 = sbr.rel (0) target = $region25
    $region24: #{tpu_custom_call.1} parent=1 // pred_region
      %198 = dma.done [#allocation4], 512
    $region25: #{tpu_custom_call.1} parent=1 // pred_fallthru
      _
    %199 = vsyncpa [#allocation3], 1
    %200 = vsyncpa [#allocation6], 1
    %201 = vsyncpa [#allocation4], 1

</llo_original>
